<compile_context>
chip_gen: v7x
topology: tpu7x:2x2x1
jax: 0.10.0
libtpu: 0.0.40
codegen_flags: <defaults>
</compile_context>

<pallas_src>
import functools

import jax
import jax.numpy as jnp
from jax.experimental import pallas as pl
from jax.experimental.pallas import tpu as pltpu

NEG_SLOPE = 0.01   # torch.nn.functional.leaky_relu default
LANE = 128


def _round_up(v, m):
    return (v + m - 1) // m * m


# ---------------------------------------------------------------------------
# Fused kernel: grid step l == conv layer l (+ leaky_relu); last step also
# applies the output Linear.
# ---------------------------------------------------------------------------
def _gnn_fused_kernel(x_ref, adj_ref, w_ref, b_ref, wout_ref, bout_ref,
                      out_ref, h_ref,
                      *, hidden, n_pad, blk_d, blk_s, lane_dense):
    l = pl.program_id(0)
    n_layers = pl.num_programs(0)
    c = hidden

    @pl.when(l == 0)
    def _():
        h_ref[...] = x_ref[...]          # (n_pad, C) padded node features

    h = h_ref[...]                        # current node state (n_pad, C)

    # Fused k|q|v|skip projection: one (n_pad, C) @ (C, 4C) MXU matmul,
    # all biases (bk|bq|bv|conv_bias) added in one shot.
    kqvs = jnp.dot(h, w_ref[0], preferred_element_type=jnp.float32) + b_ref[0]
    k = kqvs[:, 0 * c:1 * c]
    q = kqvs[:, 1 * c:2 * c]
    v = kqvs[:, 2 * c:3 * c]
    skip = kqvs[:, 3 * c:4 * c]           # x @ Ws + conv bias

    adj = adj_ref[...]                    # (n_pad, n_pad), adj[dst, src]

    if lane_dense:
        # src tile >= 128: put src on the lane axis -> full vregs for the
        # sigmoid / multiply / lane-reduce.  One transpose per layer (XLU).
        qt = q.T                          # (C, n_pad)
        vt = v.T

    n_dst_blocks = n_pad // blk_d
    n_src_blocks = n_pad // blk_s

    for db in range(n_dst_blocks):
        d0 = db * blk_d
        k_blk = k[d0:d0 + blk_d, :]                      # (blk_d, C)
        acc = skip[d0:d0 + blk_d, :]                     # start from skip+bias
        for sb in range(n_src_blocks):
            s0 = sb * blk_s
            a_blk = adj[d0:d0 + blk_d, s0:s0 + blk_s]    # (blk_d, blk_s)
            if lane_dense:
                # (dst, C, src) layout, src on lanes.
                gate = jax.nn.sigmoid(k_blk[:, :, None]
                                      + qt[None, :, s0:s0 + blk_s])
                msg = jnp.where(a_blk[:, None, :] > 0,
                                gate * vt[None, :, s0:s0 + blk_s], 0.0)
                acc = acc + jnp.sum(msg, axis=2)
            else:
                # small graphs: (dst, src, C) layout (C on lanes).
                q_blk = q[s0:s0 + blk_s, :]
                v_blk = v[s0:s0 + blk_s, :]
                gate = jax.nn.sigmoid(k_blk[:, None, :] + q_blk[None, :, :])
                msg = jnp.where(a_blk[:, :, None] > 0,
                                gate * v_blk[None, :, :], 0.0)
                acc = acc + jnp.sum(msg, axis=1)
        # fused leaky_relu, write the new node state for this dst block.
        h_ref[pl.ds(d0, blk_d), :] = jnp.where(acc > 0, acc, NEG_SLOPE * acc)

    @pl.when(l == n_layers - 1)
    def _():
        hf = h_ref[...]
        out_ref[...] = (jnp.dot(hf, wout_ref[...],
                                preferred_element_type=jnp.float32)
                        + bout_ref[...])


# ---------------------------------------------------------------------------
# Parameter packing / wrapper
# ---------------------------------------------------------------------------
def _cat_conv(p, c_in_pad):
    """Wk|Wq|Wv|Ws -> (c_in_pad, 4C); bk|bq|bv|conv_bias -> (1, 4C)."""
    w = jnp.concatenate([p["wk"], p["wq"], p["wv"], p["ws"]], axis=1)
    if w.shape[0] < c_in_pad:
        w = jnp.pad(w, ((0, c_in_pad - w.shape[0]), (0, 0)))
    b = jnp.concatenate([p["bk"], p["bq"], p["bv"], p["bias"]], axis=1)
    return w, b


def gnn_forward(x, adj, params):
    n, num_features = x.shape
    hidden = params["hidden"][0]["wk"].shape[0]
    out_ch = params["out_w"].shape[1]
    c4 = 4 * hidden

    # ---- static geometry ---------------------------------------------------
    if n <= LANE:
        n_pad = _round_up(n, 8)
        blk_d = blk_s = n_pad
    else:
        n_pad = _round_up(n, LANE)
        blk_d = blk_s = LANE
    lane_dense = blk_s >= LANE
    out_pad = _round_up(out_ch, LANE)     # lane-dense final store

    # ---- pack / pad operands ------------------------------------------------
    x_p = jnp.zeros((n_pad, hidden), jnp.float32).at[:n, :num_features].set(x)
    adj_p = jnp.zeros((n_pad, n_pad), jnp.float32).at[:n, :n].set(adj)

    w_in, b_in = _cat_conv(params["input"], hidden)
    hid = [_cat_conv(p, hidden) for p in params["hidden"]]
    # layer schedule: input conv, then the 4 shared hidden convs three times.
    w_list = [w_in] + [hid[i][0] for _ in range(3) for i in range(4)]
    b_list = [b_in] + [hid[i][1] for _ in range(3) for i in range(4)]
    w_all = jnp.stack(w_list)             # (13, hidden, 4*hidden)
    b_all = jnp.stack(b_list)             # (13, 1, 4*hidden)
    num_layers = w_all.shape[0]

    w_out = (jnp.zeros((hidden, out_pad), jnp.float32)
             .at[:, :out_ch].set(params["out_w"]))
    b_out = (jnp.zeros((1, out_pad), jnp.float32)
             .at[:, :out_ch].set(params["out_b"]))

    kernel = functools.partial(_gnn_fused_kernel, hidden=hidden, n_pad=n_pad,
                               blk_d=blk_d, blk_s=blk_s, lane_dense=lane_dense)

    out = pl.pallas_call(
        kernel,
        out_shape=jax.ShapeDtypeStruct((n_pad, out_pad), jnp.float32),
        grid_spec=pltpu.PrefetchScalarGridSpec(
            num_scalar_prefetch=0,
            grid=(num_layers,),
            in_specs=[
                pl.BlockSpec((n_pad, hidden), lambda l: (0, 0)),     # x (padded)
                pl.BlockSpec((n_pad, n_pad), lambda l: (0, 0)),      # adj
                pl.BlockSpec((1, hidden, c4), lambda l: (l, 0, 0)),  # W per layer
                pl.BlockSpec((1, 1, c4), lambda l: (l, 0, 0)),       # b per layer
                pl.BlockSpec((hidden, out_pad), lambda l: (0, 0)),   # out Linear W
                pl.BlockSpec((1, out_pad), lambda l: (0, 0)),        # out Linear b
            ],
            out_specs=pl.BlockSpec((n_pad, out_pad), lambda l: (0, 0)),
            scratch_shapes=[pltpu.VMEM((n_pad, hidden), jnp.float32)],
        ),
        compiler_params=pltpu.CompilerParams(
            dimension_semantics=("arbitrary",)),   # layers are sequential
    )(x_p, adj_p, w_all, b_all, w_out, b_out)

    return out[:n, :out_ch]


# ---------------------------------------------------------------------------
# Parameter init (matches PyG module structure)
# ---------------------------------------------------------------------------
def init_conv_params(key, c_in, c_out):
    ks = jax.random.split(key, 7)
    s = 1.0 / jnp.sqrt(jnp.float32(c_in))
    u = lambda k, shape: jax.random.uniform(k, shape, jnp.float32, -s, s)
    return {
        "wk": u(ks[0], (c_in, c_out)), "bk": u(ks[1], (1, c_out)),
        "wq": u(ks[2], (c_in, c_out)), "bq": u(ks[3], (1, c_out)),
        "wv": u(ks[4], (c_in, c_out)), "bv": u(ks[5], (1, c_out)),
        "ws": u(ks[6], (c_in, c_out)),                 # lin_skip has bias=False
        "bias": jnp.zeros((1, c_out), jnp.float32),    # conv's own bias (zeros)
    }


def init_gnn_params(key, num_features, hidden_channels, output_channel):
    keys = jax.random.split(key, 7)
    params = {
        "input": init_conv_params(keys[0], num_features, hidden_channels),
        "hidden": [init_conv_params(keys[1 + i], hidden_channels, hidden_channels)
                   for i in range(4)],
    }
    s = 1.0 / jnp.sqrt(jnp.float32(hidden_channels))
    params["out_w"] = jax.random.uniform(keys[5], (hidden_channels, output_channel),
                                         jnp.float32, -s, s)
    params["out_b"] = jax.random.uniform(keys[6], (1, output_channel),
                                         jnp.float32, -s, s)
    return params


# ---------------------------------------------------------------------------
# Pure-JAX reference (for correctness check)
# ---------------------------------------------------------------------------
def _conv_ref(x, adj, p):
    k = x @ p["wk"] + p["bk"]
    q = x @ p["wq"] + p["bq"]
    v = x @ p["wv"] + p["bv"]
    gate = jax.nn.sigmoid(k[:, None, :] + q[None, :, :])
    agg = jnp.sum(adj[:, :, None] * (gate * v[None, :, :]), axis=1)
    out = agg + x @ p["ws"] + p["bias"]
    return jnp.where(out > 0, out, NEG_SLOPE * out)


def gnn_reference(x, adj, params):
    h = _conv_ref(x, adj, params["input"])
    for _ in range(3):
        for p in params["hidden"]:
            h = _conv_ref(h, adj, p)
    return h @ params["out_w"] + params["out_b"]


if __name__ == "__main__":
    key = jax.random.PRNGKey(0)
    num_nodes = 8
    num_features = 4
    hidden_channels = 32
    output_channel = 3

    k_x, k_p = jax.random.split(key)
    x = jax.random.normal(k_x, (num_nodes, num_features), jnp.float32)

    # deterministic small graph: bidirectional ring + a couple of chords
    src = jnp.array([0, 1, 2, 3, 4, 5, 6, 7, 1, 2, 3, 4, 5, 6, 7, 0, 0, 4],
                    dtype=jnp.int32)
    dst = jnp.array([1, 2, 3, 4, 5, 6, 7, 0, 0, 1, 2, 3, 4, 5, 6, 7, 4, 0],
                    dtype=jnp.int32)
    adj = jnp.zeros((num_nodes, num_nodes), jnp.float32).at[dst, src].set(1.0)

    params = init_gnn_params(k_p, num_features, hidden_channels, output_channel)

    out = jax.jit(gnn_forward)(x, adj, params)
    jax.block_until_ready(out)

    assert out.shape == (num_nodes, output_channel)
    assert jnp.all(jnp.isfinite(out))

    ref = gnn_reference(x, adj, params)
    assert jnp.allclose(out, ref, rtol=2e-2, atol=2e-2), (
        f"max abs err = {jnp.max(jnp.abs(out - ref))}")

    print("KERNEL_OK")
</pallas_src>

<mosaic_0001>
module attributes {stable_mosaic.version = 11 : i64} {
  func.func @_gnn_fused_kernel(%arg0: i32, %arg1: memref<8x32xf32, #tpu.memory_space<vmem>>, %arg2: memref<8x8xf32, #tpu.memory_space<vmem>>, %arg3: memref<1x32x128xf32, #tpu.memory_space<vmem>>, %arg4: memref<1x1x128xf32, #tpu.memory_space<vmem>>, %arg5: memref<32x128xf32, #tpu.memory_space<vmem>>, %arg6: memref<1x128xf32, #tpu.memory_space<vmem>>, %arg7: memref<8x128xf32, #tpu.memory_space<vmem>>, %arg8: memref<8x32xf32, #tpu.memory_space<vmem>>) attributes {dimension_semantics = [#tpu.dimension_semantics<arbitrary>], iteration_bounds = array<i64: 13>, scalar_prefetch = 0 : i64, scratch_operands = 1 : i64, tpu.core_type = #tpu.core_type<tc>, window_params = [{pipeline_mode = #tpu.pipeline_mode<synchronous>, transform_indices = @transform_0, window_bounds = array<i64: 8, 32>}, {pipeline_mode = #tpu.pipeline_mode<synchronous>, transform_indices = @transform_1, window_bounds = array<i64: 8, 8>}, {transform_indices = @transform_2, window_bounds = array<i64: 1, 32, 128>}, {transform_indices = @transform_3, window_bounds = array<i64: 1, 1, 128>}, {pipeline_mode = #tpu.pipeline_mode<synchronous>, transform_indices = @transform_4, window_bounds = array<i64: 32, 128>}, {pipeline_mode = #tpu.pipeline_mode<synchronous>, transform_indices = @transform_5, window_bounds = array<i64: 1, 128>}, {pipeline_mode = #tpu.pipeline_mode<synchronous>, transform_indices = @transform_6, window_bounds = array<i64: 8, 128>}]} {
    %c0_i32 = arith.constant 0 : i32
    %0 = arith.cmpi eq, %arg0, %c0_i32 : i32
    %1 = arith.extui %0 : i1 to i32
    %c0_i32_0 = arith.constant 0 : i32
    %2 = arith.cmpi ne, %1, %c0_i32_0 : i32
    scf.if %2 {
      %c0_19 = arith.constant 0 : index
      %c0_20 = arith.constant 0 : index
      %47 = vector.load %arg1[%c0_19, %c0_20] : memref<8x32xf32, #tpu.memory_space<vmem>>, vector<8x32xf32>
      %c0_21 = arith.constant 0 : index
      %c0_22 = arith.constant 0 : index
      %48 = vector.load %arg8[%c0_21, %c0_22] : memref<8x32xf32, #tpu.memory_space<vmem>>, vector<8x32xf32>
      tpu.vector_store %arg8[%c0_21, %c0_22], %47 {strides = array<i32>} : memref<8x32xf32, #tpu.memory_space<vmem>>, vector<8x32xf32>,
    } else {
    }
    %c0 = arith.constant 0 : index
    %c0_1 = arith.constant 0 : index
    %3 = vector.load %arg8[%c0, %c0_1] : memref<8x32xf32, #tpu.memory_space<vmem>>, vector<8x32xf32>
    %c0_2 = arith.constant 0 : index
    %c0_3 = arith.constant 0 : index
    %c0_4 = arith.constant 0 : index
    %4 = vector.load %arg3[%c0_2, %c0_3, %c0_4] : memref<1x32x128xf32, #tpu.memory_space<vmem>>, vector<1x32x128xf32>
    %5 = vector.shape_cast %4 : vector<1x32x128xf32> to vector<32x128xf32>
    %cst = arith.constant dense<0.000000e+00> : vector<8x128xf32>
    %6 = tpu.matmul %3, %5, %cst {dimension_numbers = #tpu.dot_dimension_numbers<[1], [0], [0], [1], [0, 0, 1, 1], [], []>} : vector<8x32xf32>, vector<32x128xf32>, vector<8x128xf32> -> vector<8x128xf32>
    %c0_5 = arith.constant 0 : index
    %c0_6 = arith.constant 0 : index
    %c0_7 = arith.constant 0 : index
    %7 = vector.load %arg4[%c0_5, %c0_6, %c0_7] : memref<1x1x128xf32, #tpu.memory_space<vmem>>, vector<1x1x128xf32>
    %8 = vector.shape_cast %7 : vector<1x1x128xf32> to vector<1x128xf32>
    %9 = vector.broadcast %8 : vector<1x128xf32> to vector<8x128xf32>
    %10 = arith.addf %6, %9 : vector<8x128xf32>
    %11 = vector.extract_strided_slice %10 {offsets = [0, 0], sizes = [8, 32], strides = [1, 1]} : vector<8x128xf32> to vector<8x32xf32>
    %12 = vector.extract_strided_slice %10 {offsets = [0, 32], sizes = [8, 32], strides = [1, 1]} : vector<8x128xf32> to vector<8x32xf32>
    %13 = vector.extract_strided_slice %10 {offsets = [0, 64], sizes = [8, 32], strides = [1, 1]} : vector<8x128xf32> to vector<8x32xf32>
    %14 = vector.extract_strided_slice %10 {offsets = [0, 96], sizes = [8, 32], strides = [1, 1]} : vector<8x128xf32> to vector<8x32xf32>
    %c0_8 = arith.constant 0 : index
    %c0_9 = arith.constant 0 : index
    %15 = vector.load %arg2[%c0_8, %c0_9] : memref<8x8xf32, #tpu.memory_space<vmem>>, vector<8x8xf32>
    %16 = vector.shape_cast %11 : vector<8x32xf32> to vector<8x1x32xf32>
    %17 = vector.shape_cast %12 : vector<8x32xf32> to vector<1x8x32xf32>
    %18 = vector.broadcast %16 : vector<8x1x32xf32> to vector<8x8x32xf32>
    %19 = vector.broadcast %17 : vector<1x8x32xf32> to vector<8x8x32xf32>
    %20 = arith.addf %18, %19 : vector<8x8x32xf32>
    %21 = arith.negf %20 : vector<8x8x32xf32>
    %22 = math.exp %21 : vector<8x8x32xf32>
    %cst_10 = arith.constant 1.000000e+00 : f32
    %23 = vector.broadcast %cst_10 : f32 to vector<8x8x32xf32>
    %24 = arith.addf %23, %22 : vector<8x8x32xf32>
    %25 = arith.divf %23, %24 : vector<8x8x32xf32>
    %26 = vector.shape_cast %15 : vector<8x8xf32> to vector<8x8x1xf32>
    %cst_11 = arith.constant 0.000000e+00 : f32
    %27 = vector.broadcast %cst_11 : f32 to vector<8x8x1xf32>
    %28 = arith.cmpf ogt, %26, %27 : vector<8x8x1xf32>
    %29 = vector.shape_cast %13 : vector<8x32xf32> to vector<1x8x32xf32>
    %30 = vector.broadcast %29 : vector<1x8x32xf32> to vector<8x8x32xf32>
    %31 = arith.mulf %25, %30 : vector<8x8x32xf32>
    %cst_12 = arith.constant 0.000000e+00 : f32
    %32 = vector.shape_cast %28 : vector<8x8x1xi1> to vector<8x8x1xi1>
    %33 = vector.broadcast %32 : vector<8x8x1xi1> to vector<8x8x32xi1>
    %34 = vector.broadcast %cst_12 : f32 to vector<8x8x32xf32>
    %35 = arith.select %33, %31, %34 : vector<8x8x32xi1>, vector<8x8x32xf32>
    %cst_13 = arith.constant dense<0.000000e+00> : vector<8x32xf32>
    %36 = vector.multi_reduction <add>, %35, %cst_13 [1] : vector<8x8x32xf32> to vector<8x32xf32>
    %37 = arith.addf %14, %36 : vector<8x32xf32>
    %cst_14 = arith.constant 0.000000e+00 : f32
    %38 = vector.broadcast %cst_14 : f32 to vector<8x32xf32>
    %39 = arith.cmpf ogt, %37, %38 : vector<8x32xf32>
    %cst_15 = arith.constant 0.00999999977 : f32
    %40 = vector.broadcast %cst_15 : f32 to vector<8x32xf32>
    %41 = arith.mulf %40, %37 : vector<8x32xf32>
    %42 = arith.select %39, %37, %41 : vector<8x32xi1>, vector<8x32xf32>
    %c0_16 = arith.constant 0 : index
    %c0_17 = arith.constant 0 : index
    %43 = vector.load %arg8[%c0_16, %c0_17] : memref<8x32xf32, #tpu.memory_space<vmem>>, vector<8x32xf32>
    tpu.vector_store %arg8[%c0_16, %c0_17], %42 {strides = array<i32>} : memref<8x32xf32, #tpu.memory_space<vmem>>, vector<8x32xf32>,
    %c12_i32 = arith.constant 12 : i32
    %44 = arith.cmpi eq, %arg0, %c12_i32 : i32
    %45 = arith.extui %44 : i1 to i32
    %c0_i32_18 = arith.constant 0 : i32
    %46 = arith.cmpi ne, %45, %c0_i32_18 : i32
    scf.if %46 {
      %c0_19 = arith.constant 0 : index
      %c0_20 = arith.constant 0 : index
      %47 = vector.load %arg8[%c0_19, %c0_20] : memref<8x32xf32, #tpu.memory_space<vmem>>, vector<8x32xf32>
      %c0_21 = arith.constant 0 : index
      %c0_22 = arith.constant 0 : index
      %48 = vector.load %arg5[%c0_21, %c0_22] : memref<32x128xf32, #tpu.memory_space<vmem>>, vector<32x128xf32>
      %cst_23 = arith.constant dense<0.000000e+00> : vector<8x128xf32>
      %49 = tpu.matmul %47, %48, %cst_23 {dimension_numbers = #tpu.dot_dimension_numbers<[1], [0], [0], [1], [0, 0, 1, 1], [], []>} : vector<8x32xf32>, vector<32x128xf32>, vector<8x128xf32> -> vector<8x128xf32>
      %c0_24 = arith.constant 0 : index
      %c0_25 = arith.constant 0 : index
      %50 = vector.load %arg6[%c0_24, %c0_25] : memref<1x128xf32, #tpu.memory_space<vmem>>, vector<1x128xf32>
      %51 = vector.broadcast %50 : vector<1x128xf32> to vector<8x128xf32>
      %52 = arith.addf %49, %51 : vector<8x128xf32>
      %c0_26 = arith.constant 0 : index
      %c0_27 = arith.constant 0 : index
      %53 = vector.load %arg7[%c0_26, %c0_27] : memref<8x128xf32, #tpu.memory_space<vmem>>, vector<8x128xf32>
      tpu.vector_store %arg7[%c0_26, %c0_27], %52 {strides = array<i32>} : memref<8x128xf32, #tpu.memory_space<vmem>>, vector<8x128xf32>,
    } else {
    }
    return
  }
  func.func @transform_0(%arg0: i32) -> (i32, i32) {
    %c0_i32 = arith.constant 0 : i32
    %c0_i32_0 = arith.constant 0 : i32
    %c0_i32_1 = arith.constant 0 : i32
    return %c0_i32, %c0_i32_0 : i32, i32
  }
  func.func @transform_1(%arg0: i32) -> (i32, i32) {
    %c0_i32 = arith.constant 0 : i32
    %c0_i32_0 = arith.constant 0 : i32
    %c0_i32_1 = arith.constant 0 : i32
    return %c0_i32, %c0_i32_0 : i32, i32
  }
  func.func @transform_2(%arg0: i32) -> (i32, i32, i32) {
    %c0_i32 = arith.constant 0 : i32
    %c0_i32_0 = arith.constant 0 : i32
    %c0_i32_1 = arith.constant 0 : i32
    return %arg0, %c0_i32, %c0_i32_0 : i32, i32, i32
  }
  func.func @transform_3(%arg0: i32) -> (i32, i32, i32) {
    %c0_i32 = arith.constant 0 : i32
    %c0_i32_0 = arith.constant 0 : i32
    %c0_i32_1 = arith.constant 0 : i32
    return %arg0, %c0_i32, %c0_i32_0 : i32, i32, i32
  }
  func.func @transform_4(%arg0: i32) -> (i32, i32) {
    %c0_i32 = arith.constant 0 : i32
    %c0_i32_0 = arith.constant 0 : i32
    %c0_i32_1 = arith.constant 0 : i32
    return %c0_i32, %c0_i32_0 : i32, i32
  }
  func.func @transform_5(%arg0: i32) -> (i32, i32) {
    %c0_i32 = arith.constant 0 : i32
    %c0_i32_0 = arith.constant 0 : i32
    %c0_i32_1 = arith.constant 0 : i32
    return %c0_i32, %c0_i32_0 : i32, i32
  }
  func.func @transform_6(%arg0: i32) -> (i32, i32) {
    %c0_i32 = arith.constant 0 : i32
    %c0_i32_0 = arith.constant 0 : i32
    %c0_i32_1 = arith.constant 0 : i32
    return %c0_i32, %c0_i32_0 : i32, i32
  }
}

</mosaic_0001>

<llo_original>
// kernel: gnn_forward.1
$region0: #{gnn_forward.1}
  #allocation0 [shape = 'u32[]', space=smem, size = 0x4, offset = 0x4, fixed_abs, tag = 'smem constant byte address 0x4 - core index']
  #allocation1 [shape = 'u32[144,128]{1,0:T(1,128)}', space=vmem, size = 0x12000, scoped, tag = 'internal scratch']
  #allocation2 [shape = 'f32[8,32]{1,0:T(8,128)}', space=vmem, size = 0x1000, scoped, tag = 'scratch operand']
  %s0 = inlined_call_operand.vmem [shape: f32[8,32], index: 0, kind: input, shape index: {}]
  %s1 = inlined_call_operand.vmem [shape: f32[8,8], index: 1, kind: input, shape index: {}]
  %s2 = inlined_call_operand.vmem [shape: f32[13,32,128], index: 2, kind: input, shape index: {}]
  %s3 = inlined_call_operand.vmem [shape: f32[13,1,128], index: 3, kind: input, shape index: {}]
  %s4 = inlined_call_operand.vmem [shape: f32[32,128], index: 4, kind: input, shape index: {}]
  %s5 = inlined_call_operand.vmem [shape: f32[1,128], index: 5, kind: input, shape index: {}]
  %s6 = inlined_call_operand.vmem [shape: f32[8,128], index: 6, kind: output, shape index: {}]
  %s7 = sld [smem:[#allocation0]]
  $region65: #{gnn_forward.1} parent=0
    _
  %s9 = ssub.s32 1, %s7
  %s10 = scalar_select 0, %s9, %s7
  loop: start=0, step=1, limit=15
  $region2: #{gnn_forward.1} parent=0 // loop_pre_header
    _
  $region3: #{gnn_forward.1} parent=0 // loop_header
    %s12 = sphi 0, %s16
    %p13 = scmp.ge.s32.totalorder %s12, 15
    %s20 = sphi 0, %s20
    %s22 = sphi 0, %s20
    %s23 = sphi 0, %s22
    %s37 = sphi 0, %s23
    %s41 = sphi 0, %s41
    %s43 = sphi 0, %s41
    %s44 = sphi 0, %s43
    %s58 = sphi 0, %s44
    %s64 = sphi 0, %s66
    %s67 = sphi 0, %s64
    %s68 = sphi 0, %s67
    %s84 = sphi 0, %s68
    %s90 = sphi 0, %s92
    %s93 = sphi 0, %s90
    %s94 = sphi 0, %s93
    %s110 = sphi 0, %s94
    %s114 = sphi 0, %s114
    %s116 = sphi 0, %s114
    %s117 = sphi 0, %s116
    %s131 = sphi 0, %s117
    %s135 = sphi 0, %s135
    %s137 = sphi 0, %s135
    %s138 = sphi 0, %s137
    %s152 = sphi 0, %s138
    %s156 = sphi 0, %s156
    %s158 = sphi 0, %s156
    %s159 = sphi 0, %s158
    %s173 = sphi 0, %s159
  $region4: #{gnn_forward.1} parent=0 // loop_header_branch
    %15 = sbr.rel (%p13) target = $region8
  $region5: #{gnn_forward.1} parent=0 // loop_body
    %s17 = ssub.s32 %s12, 1
    %s18 = ssub.s32 %s12, 2
    %s19 = sadd.s32 %s12, 1
    %s21 = sadd.s32 %s20, 1
    %p24 = scmp.eq.s32.totalorder %s12, 12
    %p25 = scmp.ne.s32.totalorder %s20, %s22
    %p26 = scmp.eq.s32.totalorder %s12, 0
    %p27 = por %p25, %p26
    %p28 = scmp.ne.s32.totalorder %s20, %s22
    %p29 = scmp.eq.s32.totalorder %s17, 12
    %p30 = por %p28, %p29
    %p31 = scmp.ne.s32.totalorder %s22, %s23
    %p32 = scmp.eq.s32.totalorder %s17, 0
    %p33 = por %p31, %p32
    %p34 = scmp.ne.s32.totalorder %s22, %s23
    %p35 = scmp.eq.s32.totalorder %s18, 12
    %p36 = por %p34, %p35
    %p38 = scmp.ne.s32.totalorder %s23, %s37
    %p39 = scmp.eq.s32.totalorder %s18, 0
    %p40 = por %p38, %p39
    %s42 = sadd.s32 %s41, 1
    %p45 = scmp.eq.s32.totalorder %s12, 12
    %p46 = scmp.ne.s32.totalorder %s41, %s43
    %p47 = scmp.eq.s32.totalorder %s12, 0
    %p48 = por %p46, %p47
    %p49 = scmp.ne.s32.totalorder %s41, %s43
    %p50 = scmp.eq.s32.totalorder %s17, 12
    %p51 = por %p49, %p50
    %p52 = scmp.ne.s32.totalorder %s43, %s44
    %p53 = scmp.eq.s32.totalorder %s17, 0
    %p54 = por %p52, %p53
    %p55 = scmp.ne.s32.totalorder %s43, %s44
    %p56 = scmp.eq.s32.totalorder %s18, 12
    %p57 = por %p55, %p56
    %p59 = scmp.ne.s32.totalorder %s44, %s58
    %p60 = scmp.eq.s32.totalorder %s18, 0
    %p61 = por %p59, %p60
    %s62 = ssub.s32 %s12, %s19
    %p63 = scmp.eq.s32.totalorder %s62, 0
    %s65 = sadd.s32 %s64, 1
    %s66 = scalar_select %p63, %s64, %s65
    %p69 = pneg %p63
    %p70 = scmp.eq.s32.totalorder %s12, 12
    %p71 = por %p69, %p70
    %p72 = scmp.ne.s32.totalorder %s64, %s67
    %p73 = scmp.eq.s32.totalorder %s12, 0
    %p74 = por %p72, %p73
    %p75 = scmp.ne.s32.totalorder %s64, %s67
    %p76 = scmp.eq.s32.totalorder %s17, 12
    %p77 = por %p75, %p76
    %p78 = scmp.ne.s32.totalorder %s67, %s68
    %p79 = scmp.eq.s32.totalorder %s17, 0
    %p80 = por %p78, %p79
    %p81 = scmp.ne.s32.totalorder %s67, %s68
    %p82 = scmp.eq.s32.totalorder %s18, 12
    %p83 = por %p81, %p82
    %p85 = scmp.ne.s32.totalorder %s68, %s84
    %p86 = scmp.eq.s32.totalorder %s18, 0
    %p87 = por %p85, %p86
    %s88 = ssub.s32 %s12, %s19
    %p89 = scmp.eq.s32.totalorder %s88, 0
    %s91 = sadd.s32 %s90, 1
    %s92 = scalar_select %p89, %s90, %s91
    %p95 = pneg %p89
    %p96 = scmp.eq.s32.totalorder %s12, 12
    %p97 = por %p95, %p96
    %p98 = scmp.ne.s32.totalorder %s90, %s93
    %p99 = scmp.eq.s32.totalorder %s12, 0
    %p100 = por %p98, %p99
    %p101 = scmp.ne.s32.totalorder %s90, %s93
    %p102 = scmp.eq.s32.totalorder %s17, 12
    %p103 = por %p101, %p102
    %p104 = scmp.ne.s32.totalorder %s93, %s94
    %p105 = scmp.eq.s32.totalorder %s17, 0
    %p106 = por %p104, %p105
    %p107 = scmp.ne.s32.totalorder %s93, %s94
    %p108 = scmp.eq.s32.totalorder %s18, 12
    %p109 = por %p107, %p108
    %p111 = scmp.ne.s32.totalorder %s94, %s110
    %p112 = scmp.eq.s32.totalorder %s18, 0
    %p113 = por %p111, %p112
    %s115 = sadd.s32 %s114, 1
    %p118 = scmp.eq.s32.totalorder %s12, 12
    %p119 = scmp.ne.s32.totalorder %s114, %s116
    %p120 = scmp.eq.s32.totalorder %s12, 0
    %p121 = por %p119, %p120
    %p122 = scmp.ne.s32.totalorder %s114, %s116
    %p123 = scmp.eq.s32.totalorder %s17, 12
    %p124 = por %p122, %p123
    %p125 = scmp.ne.s32.totalorder %s116, %s117
    %p126 = scmp.eq.s32.totalorder %s17, 0
    %p127 = por %p125, %p126
    %p128 = scmp.ne.s32.totalorder %s116, %s117
    %p129 = scmp.eq.s32.totalorder %s18, 12
    %p130 = por %p128, %p129
    %p132 = scmp.ne.s32.totalorder %s117, %s131
    %p133 = scmp.eq.s32.totalorder %s18, 0
    %p134 = por %p132, %p133
    %s136 = sadd.s32 %s135, 1
    %p139 = scmp.eq.s32.totalorder %s12, 12
    %p140 = scmp.ne.s32.totalorder %s135, %s137
    %p141 = scmp.eq.s32.totalorder %s12, 0
    %p142 = por %p140, %p141
    %p143 = scmp.ne.s32.totalorder %s135, %s137
    %p144 = scmp.eq.s32.totalorder %s17, 12
    %p145 = por %p143, %p144
    %p146 = scmp.ne.s32.totalorder %s137, %s138
    %p147 = scmp.eq.s32.totalorder %s17, 0
    %p148 = por %p146, %p147
    %p149 = scmp.ne.s32.totalorder %s137, %s138
    %p150 = scmp.eq.s32.totalorder %s18, 12
    %p151 = por %p149, %p150
    %p153 = scmp.ne.s32.totalorder %s138, %s152
    %p154 = scmp.eq.s32.totalorder %s18, 0
    %p155 = por %p153, %p154
    %s157 = sadd.s32 %s156, 1
    %p160 = scmp.eq.s32.totalorder %s12, 12
    %p161 = scmp.ne.s32.totalorder %s156, %s158
    %p162 = scmp.eq.s32.totalorder %s12, 0
    %p163 = por %p161, %p162
    %p164 = scmp.ne.s32.totalorder %s156, %s158
    %p165 = scmp.eq.s32.totalorder %s17, 12
    %p166 = por %p164, %p165
    %p167 = scmp.ne.s32.totalorder %s158, %s159
    %p168 = scmp.eq.s32.totalorder %s17, 0
    %p169 = por %p167, %p168
    %p170 = scmp.ne.s32.totalorder %s158, %s159
    %p171 = scmp.eq.s32.totalorder %s18, 12
    %p172 = por %p170, %p171
    %p174 = scmp.ne.s32.totalorder %s159, %s173
    %p175 = scmp.eq.s32.totalorder %s18, 0
    %p176 = por %p174, %p175
    %p177 = scmp.le.s32.totalorder 1, %s12
    %p178 = scmp.lt.s32.totalorder %s12, 14
    %p179 = pnand %p177, %p178
    %p180 = pneg %p179
    // Predicated region
    $region9: #{gnn_forward.1} parent=5 // pred_check
      _
    $region10: #{gnn_forward.1} parent=5 // pred_check_branch
      %182 = sbr.rel (%p179) target = $region12
    $region11: #{gnn_forward.1} parent=5 // pred_region
      %s183 = ssub.s32 %s12, 1
      // Predicated region
      $region13: #{gnn_forward.1} parent=11 // pred_check
        %p184 = pneg %p33
      $region14: #{gnn_forward.1} parent=11 // pred_check_branch
        %186 = sbr.rel (%p184) target = $region16
      $region15: #{gnn_forward.1} parent=11 // pred_region
        _
      $region16: #{gnn_forward.1} parent=11 // pred_fallthru
        _
      // Predicated region
      $region17: #{gnn_forward.1} parent=11 // pred_check
        %p187 = pneg %p54
      $region18: #{gnn_forward.1} parent=11 // pred_check_branch
        %189 = sbr.rel (%p187) target = $region20
      $region19: #{gnn_forward.1} parent=11 // pred_region
        _
      $region20: #{gnn_forward.1} parent=11 // pred_fallthru
        _
      // Predicated region
      $region21: #{gnn_forward.1} parent=11 // pred_check
        %p190 = pneg %p127
      $region22: #{gnn_forward.1} parent=11 // pred_check_branch
        %192 = sbr.rel (%p190) target = $region24
      $region23: #{gnn_forward.1} parent=11 // pred_region
        _
      $region24: #{gnn_forward.1} parent=11 // pred_fallthru
        _
      // Predicated region
      $region25: #{gnn_forward.1} parent=11 // pred_check
        %p193 = pneg %p148
      $region26: #{gnn_forward.1} parent=11 // pred_check_branch
        %195 = sbr.rel (%p193) target = $region28
      $region27: #{gnn_forward.1} parent=11 // pred_region
        _
      $region28: #{gnn_forward.1} parent=11 // pred_fallthru
        _
    $region12: #{gnn_forward.1} parent=5 // pred_fallthru
      _
    %p196 = scmp.lt.s32.totalorder %s12, 13
    // Predicated region
    $region29: #{gnn_forward.1} parent=5 // pred_check
      %p197 = pneg %p196
    $region30: #{gnn_forward.1} parent=5 // pred_check_branch
      %199 = sbr.rel (%p197) target = $region32
    $region31: #{gnn_forward.1} parent=5 // pred_region
      // Predicated region
      $region33: #{gnn_forward.1} parent=31 // pred_check
        %p200 = pneg %p74
      $region34: #{gnn_forward.1} parent=31 // pred_check_branch
        %202 = sbr.rel (%p200) target = $region36
      $region35: #{gnn_forward.1} parent=31 // pred_region
        %p203 = scmp.lt.s32.totalorder %s12, 12
        %s204 = scalar_select %p203, %s12, 12
        %s205 = smul.addr %s204, 4
        %s206 = smul.addr %s205, 8
        %s207 = scalar_lea.vmem %s2, %s206
      $region36: #{gnn_forward.1} parent=31 // pred_fallthru
        _
      // Predicated region
      $region37: #{gnn_forward.1} parent=31 // pred_check
        %p208 = pneg %p100
      $region38: #{gnn_forward.1} parent=31 // pred_check_branch
        %210 = sbr.rel (%p208) target = $region40
      $region39: #{gnn_forward.1} parent=31 // pred_region
        %p211 = scmp.lt.s32.totalorder %s12, 12
        %s212 = scalar_select %p211, %s12, 12
        %s213 = scalar_lea.vmem %s3, %s212
      $region40: #{gnn_forward.1} parent=31 // pred_fallthru
        _
    $region32: #{gnn_forward.1} parent=5 // pred_fallthru
      _
    %p214 = scmp.le.s32.totalorder 1, %s12
    %p215 = scmp.lt.s32.totalorder %s12, 14
    %p216 = pnand %p214, %p215
    %p217 = pneg %p216
    // Predicated region
    $region41: #{gnn_forward.1} parent=5 // pred_check
      _
    $region42: #{gnn_forward.1} parent=5 // pred_check_branch
      %219 = sbr.rel (%p216) target = $region44
    $region43: #{gnn_forward.1} parent=5 // pred_region
      %s220 = ssub.s32 %s12, 1
      %p221 = pneg %p33
      %p222 = pneg %p30
      %p223 = pneg %p54
      %p224 = pneg %p51
      %p225 = scmp.lt.s32.totalorder %s17, 12
      %s226 = scalar_select %p225, %s17, 12
      %s227 = smul.addr %s226, 4
      %s228 = smul.addr %s227, 8
      %s229 = scalar_lea.vmem %s2, %s228
      %p230 = pneg %p80
      %p231 = pneg %p77
      %p232 = scmp.lt.s32.totalorder %s17, 12
      %s233 = scalar_select %p232, %s17, 12
      %s234 = scalar_lea.vmem %s3, %s233
      %p235 = pneg %p106
      %p236 = pneg %p103
      %p237 = pneg %p127
      %p238 = pneg %p124
      %p239 = pneg %p148
      %p240 = pneg %p145
      %p241 = pneg %p169
      %p242 = pneg %p166
      %p243 = scmp.lt.s32.totalorder %s17, 12
      %s244 = scalar_select %p243, %s17, 12
      %s245 = smul.addr %s244, 4
      %s246 = smul.addr %s245, 8
      %s247 = scalar_lea.vmem %s2, %s246
      %p248 = scmp.lt.s32.totalorder %s17, 12
      %s249 = scalar_select %p248, %s17, 12
      %s250 = scalar_lea.vmem %s3, %s249
      %p251 = scmp.eq.s32.totalorder %s17, 0
      // Predicated region
      $region45: #{gnn_forward.1} parent=43 // pred_check
        %p252 = pneg %p251
      $region46: #{gnn_forward.1} parent=43 // pred_check_branch
        %254 = sbr.rel (%p252) target = $region48
      $region47: #{gnn_forward.1} parent=43 // pred_region
        %v255 = vld [vmem:[%s0] sm:$0xff]
        %vm256 = vcmask 261120
        %257 = vst.msk [vmem:[#allocation2] sm:$0xff] %vm256, %v255
      $region48: #{gnn_forward.1} parent=43 // pred_fallthru
        _
      %v258 = vld [vmem:[#allocation2] sm:$0xff]
      %v259 = vld [vmem:[%s247] sm:$0xff]
      %v260 = vld [vmem:[%s247 + $0x8] sm:$0xff]
      %v261 = vld [vmem:[%s247 + $0x10] sm:$0xff]
      %v262 = vld [vmem:[%s247 + $0x18] sm:$0xff]
      %v263 = vld [vmem:[%s250] sm:$0x1]
      %v265 = vlaneseq
      %v266 = vshrl.u32 %v265, 7
      %v267 = vsub.s32 0, %v266
      %v268 = vrot.slane %v263, %v267
      %vm270 = vcmask 261120
      %v272 = vsel %vm270, %v258, 0
      %274 = vmatprep.subr.mxu0 0.0
      %275 = vmatpush1.msra.mxu0 %v259
      %276 = vmatprep.subr.mxu0 0.0
      %277 = vmatpush1.msra.mxu0 %v260
      %278 = vmatprep.subr.mxu0 0.0
      %279 = vmatpush1.msra.mxu0 %v261
      %280 = vmatprep.subr.mxu0 0.0
      %281 = vmatpush1.msra.mxu0 %v262
      %282 = vmatprep.subr.mxu0 0.0
      %283 = vmatpush1.msra.mxu0 0.0
      %284 = vmatprep.subr.mxu0 0.0
      %285 = vmatpush1.msra.mxu0 0.0
      %286 = vmatprep.subr.mxu0 0.0
      %287 = vmatpush1.msra.mxu0 0.0
      %288 = vmatprep.subr.mxu0 0.0
      %289 = vmatpush1.msra.mxu0 0.0
      %290 = vmatprep.subr.mxu0 0.0
      %291 = vmatpush1.msra.mxu0 0.0
      %292 = vmatprep.subr.mxu0 0.0
      %293 = vmatpush1.msra.mxu0 0.0
      %294 = vmatprep.subr.mxu0 0.0
      %295 = vmatpush1.msra.mxu0 0.0
      %296 = vmatprep.subr.mxu0 0.0
      %297 = vmatpush1.msra.mxu0 0.0
      %298 = vmatprep.subr.mxu0 0.0
      %299 = vmatpush1.msra.mxu0 0.0
      %300 = vmatprep.subr.mxu0 0.0
      %301 = vmatpush1.msra.mxu0 0.0
      %302 = vmatprep.subr.mxu0 0.0
      %303 = vmatpush1.msra.mxu0 0.0
      %304 = vmatprep.subr.mxu0 0.0
      %305 = vmatpush1.msra.mxu0 0.0
      %306 = vmatprep.subr.mxu0 0.0
      %307 = vmatpush1.msra.mxu0 0.0
      %308 = vmatprep.subr.mxu0 0.0
      %309 = vmatpush1.msra.mxu0 0.0
      %310 = vmatprep.subr.mxu0 0.0
      %311 = vmatpush1.msra.mxu0 0.0
      %312 = vmatprep.subr.mxu0 0.0
      %313 = vmatpush1.msra.mxu0 0.0
      %314 = vmatprep.subr.mxu0 0.0
      %315 = vmatpush1.msra.mxu0 0.0
      %316 = vmatprep.subr.mxu0 0.0
      %317 = vmatpush1.msra.mxu0 0.0
      %318 = vmatprep.subr.mxu0 0.0
      %319 = vmatpush1.msra.mxu0 0.0
      %320 = vmatprep.subr.mxu0 0.0
      %321 = vmatpush1.msra.mxu0 0.0
      %322 = vmatprep.subr.mxu0 0.0
      %323 = vmatpush1.msra.mxu0 0.0
      %324 = vmatprep.subr.mxu0 0.0
      %325 = vmatpush1.msra.mxu0 0.0
      %326 = vmatprep.subr.mxu0 0.0
      %327 = vmatpush1.msra.mxu0 0.0
      %328 = vmatprep.subr.mxu0 0.0
      %329 = vmatpush1.msra.mxu0 0.0
      %330 = vmatprep.subr.mxu0 0.0
      %331 = vmatpush1.msra.mxu0 0.0
      %332 = vmatprep.subr.mxu0 0.0
      %333 = vmatpush1.msra.mxu0 0.0
      %334 = vmatprep.subr.mxu0 0.0
      %335 = vmatpush1.msra.mxu0 0.0
      %336 = vmatprep.subr.mxu0 0.0
      %337 = vmatpush1.msra.mxu0 0.0
      %338 = vmatprep.mubr.f32.mxu0 0.0
      %339 = vmatmul.mubr.f32.gmra.mrb[0].mxu0 %v272
      %v340 = vpop.f32.mrb[0].mxu0
      %v341 = vadd.f32 %v268, %v340
      %v342 = vpop.f32.mrb[0].mxu0
      %343 = vdwg.mxu0
      %v344 = vld [vmem:[%s1] sm:$0xff]
      %v346 = vcombine.high %v341, %v341
      %v348 = vunpack.c.l.s4 1966171168
      %v349 = vunpack.c.0.s8 %v348
      %v350 = vlaneseq
      %v351 = vshrl.u32 %v350, 7
      %v352 = vsub.s32 %v349, %v351
      %v353 = vrot.slane %v341, %v352
      %v355 = vunpack.c.l.s4 1966171168
      %v356 = vunpack.c.0.s8 %v355
      %v357 = vlaneseq
      %v358 = vshrl.u32 %v357, 7
      %v359 = vsub.s32 %v356, %v358
      %v360 = vrot.slane %v346, %v359
      %v361 = vcombine.high %v353, %v353
      %v362 = vcombine.high %v360, %v360
      %v364 = vunpack.c.l.s4 1966171168
      %v365 = vunpack.c.0.s8 %v364
      %v366 = vlaneseq
      %v367 = vshrl.u32 %v366, 7
      %v368 = vsub.s32 %v365, %v367
      %v369 = vrot.slane %v353, %v368
      %v371 = vunpack.c.l.s4 1966171168
      %v372 = vunpack.c.0.s8 %v371
      %v373 = vlaneseq
      %v374 = vshrl.u32 %v373, 7
      %v375 = vsub.s32 %v372, %v374
      %v376 = vrot.slane %v360, %v375
      %v378 = vunpack.c.l.s4 1966171168
      %v379 = vunpack.c.0.s8 %v378
      %v380 = vlaneseq
      %v381 = vshrl.u32 %v380, 7
      %v382 = vsub.s32 %v379, %v381
      %v383 = vrot.slane %v361, %v382
      %v385 = vunpack.c.l.s4 1966171168
      %v386 = vunpack.c.0.s8 %v385
      %v387 = vlaneseq
      %v388 = vshrl.u32 %v387, 7
      %v389 = vsub.s32 %v386, %v388
      %v390 = vrot.slane %v362, %v389
      %v391 = vcombine.high %v369, %v369
      %v392 = vcombine.high %v376, %v376
      %v393 = vcombine.high %v383, %v383
      %v394 = vcombine.high %v390, %v390
      %v395 = vlaneseq
      %v396 = vshrl.u32 %v395, 7
      %v397 = vsub.s32 0, %v396
      %v398 = vrot.slane %v369, %v397
      %v399 = vlaneseq
      %v400 = vshrl.u32 %v399, 7
      %v401 = vsub.s32 0, %v400
      %v402 = vrot.slane %v383, %v401
      %v403 = vlaneseq
      %v404 = vshrl.u32 %v403, 7
      %v405 = vsub.s32 0, %v404
      %v406 = vrot.slane %v391, %v405
      %v407 = vlaneseq
      %v408 = vshrl.u32 %v407, 7
      %v409 = vsub.s32 0, %v408
      %v410 = vrot.slane %v393, %v409
      %v411 = vlaneseq
      %v412 = vshrl.u32 %v411, 7
      %v413 = vsub.s32 0, %v412
      %v414 = vrot.slane %v376, %v413
      %v415 = vlaneseq
      %v416 = vshrl.u32 %v415, 7
      %v417 = vsub.s32 0, %v416
      %v418 = vrot.slane %v390, %v417
      %v419 = vlaneseq
      %v420 = vshrl.u32 %v419, 7
      %v421 = vsub.s32 0, %v420
      %v422 = vrot.slane %v392, %v421
      %v423 = vlaneseq
      %v424 = vshrl.u32 %v423, 7
      %v425 = vsub.s32 0, %v424
      %v426 = vrot.slane %v394, %v425
      %435 = vrot.lane.b32.xlu0 %v341, 96
      %v436 = vpop.permute.xlu0 %435
      %v438 = vadd.f32 %v398, %v436
      %v439 = vadd.f32 %v402, %v436
      %v440 = vadd.f32 %v406, %v436
      %v441 = vadd.f32 %v410, %v436
      %v442 = vadd.f32 %v414, %v436
      %v443 = vadd.f32 %v418, %v436
      %v444 = vadd.f32 %v422, %v436
      %v445 = vadd.f32 %v426, %v436
      %v446 = vxor.u32 %v438, 2147483648
      %v447 = vxor.u32 %v439, 2147483648
      %v448 = vxor.u32 %v440, 2147483648
      %v449 = vxor.u32 %v441, 2147483648
      %v450 = vxor.u32 %v442, 2147483648
      %v451 = vxor.u32 %v443, 2147483648
      %v452 = vxor.u32 %v444, 2147483648
      %v453 = vxor.u32 %v445, 2147483648
      %v454 = vmul.f32 %v446, 1.442695
      %v455 = vpow.pop %v454
      %v456 = vmul.f32 %v447, 1.442695
      %v457 = vpow.pop %v456
      %v458 = vmul.f32 %v448, 1.442695
      %v459 = vpow.pop %v458
      %v460 = vmul.f32 %v449, 1.442695
      %v461 = vpow.pop %v460
      %v462 = vmul.f32 %v450, 1.442695
      %v463 = vpow.pop %v462
      %v464 = vmul.f32 %v451, 1.442695
      %v465 = vpow.pop %v464
      %v466 = vmul.f32 %v452, 1.442695
      %v467 = vpow.pop %v466
      %v468 = vmul.f32 %v453, 1.442695
      %v469 = vpow.pop %v468
      %v470 = vadd.f32 %v455, 1.0
      %v471 = vadd.f32 %v457, 1.0
      %v472 = vadd.f32 %v459, 1.0
      %v473 = vadd.f32 %v461, 1.0
      %v474 = vadd.f32 %v463, 1.0
      %v475 = vadd.f32 %v465, 1.0
      %v476 = vadd.f32 %v467, 1.0
      %v477 = vadd.f32 %v469, 1.0
      %v478 = vrcp.pop %v470
      %v479 = vmul.f32 1.0, %v478
      %v480 = vrcp.pop %v471
      %v481 = vmul.f32 1.0, %v480
      %v482 = vrcp.pop %v472
      %v483 = vmul.f32 1.0, %v482
      %v484 = vrcp.pop %v473
      %v485 = vmul.f32 1.0, %v484
      %v486 = vrcp.pop %v474
      %v487 = vmul.f32 1.0, %v486
      %v488 = vrcp.pop %v475
      %v489 = vmul.f32 1.0, %v488
      %v490 = vrcp.pop %v476
      %v491 = vmul.f32 1.0, %v490
      %v492 = vrcp.pop %v477
      %v493 = vmul.f32 1.0, %v492
      %v494 = vlaneseq
      %v495 = vshrl.u32 %v494, 7
      %v496 = vsub.s32 0, %v495
      %v497 = vrot.slane %v344, %v496
      %499 = vbcast.lane.b32.xlu0 %v497, 256
      %v500 = vpop.permute.xlu0 %499
      %v501 = vlaneseq
      %v502 = vshrl.u32 %v501, 7
      %v503 = vsub.s32 1, %v502
      %v504 = vrot.slane %v344, %v503
      %506 = vbcast.lane.b32.xlu0 %v504, 256
      %v507 = vpop.permute.xlu0 %506
      %v508 = vlaneseq
      %v509 = vshrl.u32 %v508, 7
      %v510 = vsub.s32 2, %v509
      %v511 = vrot.slane %v344, %v510
      %513 = vbcast.lane.b32.xlu0 %v511, 256
      %v514 = vpop.permute.xlu0 %513
      %v515 = vlaneseq
      %v516 = vshrl.u32 %v515, 7
      %v517 = vsub.s32 3, %v516
      %v518 = vrot.slane %v344, %v517
      %520 = vbcast.lane.b32.xlu0 %v518, 256
      %v521 = vpop.permute.xlu0 %520
      %v522 = vlaneseq
      %v523 = vshrl.u32 %v522, 7
      %v524 = vsub.s32 4, %v523
      %v525 = vrot.slane %v344, %v524
      %527 = vbcast.lane.b32.xlu0 %v525, 256
      %v528 = vpop.permute.xlu0 %527
      %v529 = vlaneseq
      %v530 = vshrl.u32 %v529, 7
      %v531 = vsub.s32 5, %v530
      %v532 = vrot.slane %v344, %v531
      %534 = vbcast.lane.b32.xlu0 %v532, 256
      %v535 = vpop.permute.xlu0 %534
      %v536 = vlaneseq
      %v537 = vshrl.u32 %v536, 7
      %v538 = vsub.s32 6, %v537
      %v539 = vrot.slane %v344, %v538
      %541 = vbcast.lane.b32.xlu0 %v539, 256
      %v542 = vpop.permute.xlu0 %541
      %v543 = vlaneseq
      %v544 = vshrl.u32 %v543, 7
      %v545 = vsub.s32 7, %v544
      %v546 = vrot.slane %v344, %v545
      %548 = vbcast.lane.b32.xlu0 %v546, 256
      %v549 = vpop.permute.xlu0 %548
      %vm550 = vcmp.gt.f32.partialorder %v500, 0.0
      %vm551 = vcmp.gt.f32.partialorder %v507, 0.0
      %vm552 = vcmp.gt.f32.partialorder %v514, 0.0
      %vm553 = vcmp.gt.f32.partialorder %v521, 0.0
      %vm554 = vcmp.gt.f32.partialorder %v528, 0.0
      %vm555 = vcmp.gt.f32.partialorder %v535, 0.0
      %vm556 = vcmp.gt.f32.partialorder %v542, 0.0
      %vm557 = vcmp.gt.f32.partialorder %v549, 0.0
      %558 = vrot.lane.b32.xlu0 %v341, 64
      %v559 = vpop.permute.xlu0 %558
      %v561 = vmul.f32 %v479, %v559
      %v562 = vmul.f32 %v481, %v559
      %v563 = vmul.f32 %v483, %v559
      %v564 = vmul.f32 %v485, %v559
      %v565 = vmul.f32 %v487, %v559
      %v566 = vmul.f32 %v489, %v559
      %v567 = vmul.f32 %v491, %v559
      %v568 = vmul.f32 %v493, %v559
      %v569 = vsel %vm550, 1, 0
      %v570 = vsel %vm551, 1, 0
      %v571 = vsel %vm552, 1, 0
      %v572 = vsel %vm553, 1, 0
      %v573 = vsel %vm554, 1, 0
      %v574 = vsel %vm555, 1, 0
      %v575 = vsel %vm556, 1, 0
      %v576 = vsel %vm557, 1, 0
      %vm577 = vcmp.eq.s32.totalorder %v569, 1
      %vm578 = vcmp.eq.s32.totalorder %v570, 1
      %vm579 = vcmp.eq.s32.totalorder %v571, 1
      %vm580 = vcmp.eq.s32.totalorder %v572, 1
      %vm581 = vcmp.eq.s32.totalorder %v573, 1
      %vm582 = vcmp.eq.s32.totalorder %v574, 1
      %vm583 = vcmp.eq.s32.totalorder %v575, 1
      %vm584 = vcmp.eq.s32.totalorder %v576, 1
      %v585 = vsel %vm577, %v561, 0.0
      %v586 = vsel %vm578, %v562, 0.0
      %v587 = vsel %vm579, %v563, 0.0
      %v588 = vsel %vm580, %v564, 0.0
      %v589 = vsel %vm581, %v565, 0.0
      %v590 = vsel %vm582, %v566, 0.0
      %v591 = vsel %vm583, %v567, 0.0
      %v592 = vsel %vm584, %v568, 0.0
      %v593 = vsel %vm270, %v585, 0.0
      %v594 = vrot.slane %v593, 4
      %v595 = vadd.f32 %v593, %v594
      %v596 = vrot.slane %v595, 2
      %v597 = vadd.f32 %v595, %v596
      %v598 = vrot.slane %v597, 1
      %v599 = vadd.f32 %v597, %v598
      %v600 = vsel %vm270, %v586, 0.0
      %v601 = vrot.slane %v600, 4
      %v602 = vadd.f32 %v600, %v601
      %v603 = vrot.slane %v602, 2
      %v604 = vadd.f32 %v602, %v603
      %v605 = vrot.slane %v604, 1
      %v606 = vadd.f32 %v604, %v605
      %v607 = vsel %vm270, %v587, 0.0
      %v608 = vrot.slane %v607, 4
      %v609 = vadd.f32 %v607, %v608
      %v610 = vrot.slane %v609, 2
      %v611 = vadd.f32 %v609, %v610
      %v612 = vrot.slane %v611, 1
      %v613 = vadd.f32 %v611, %v612
      %v614 = vsel %vm270, %v588, 0.0
      %v615 = vrot.slane %v614, 4
      %v616 = vadd.f32 %v614, %v615
      %v617 = vrot.slane %v616, 2
      %v618 = vadd.f32 %v616, %v617
      %v619 = vrot.slane %v618, 1
      %v620 = vadd.f32 %v618, %v619
      %v621 = vsel %vm270, %v589, 0.0
      %v622 = vrot.slane %v621, 4
      %v623 = vadd.f32 %v621, %v622
      %v624 = vrot.slane %v623, 2
      %v625 = vadd.f32 %v623, %v624
      %v626 = vrot.slane %v625, 1
      %v627 = vadd.f32 %v625, %v626
      %v628 = vsel %vm270, %v590, 0.0
      %v629 = vrot.slane %v628, 4
      %v630 = vadd.f32 %v628, %v629
      %v631 = vrot.slane %v630, 2
      %v632 = vadd.f32 %v630, %v631
      %v633 = vrot.slane %v632, 1
      %v634 = vadd.f32 %v632, %v633
      %v635 = vsel %vm270, %v591, 0.0
      %v636 = vrot.slane %v635, 4
      %v637 = vadd.f32 %v635, %v636
      %v638 = vrot.slane %v637, 2
      %v639 = vadd.f32 %v637, %v638
      %v640 = vrot.slane %v639, 1
      %v641 = vadd.f32 %v639, %v640
      %v642 = vsel %vm270, %v592, 0.0
      %v643 = vrot.slane %v642, 4
      %v644 = vadd.f32 %v642, %v643
      %v645 = vrot.slane %v644, 2
      %v646 = vadd.f32 %v644, %v645
      %v647 = vrot.slane %v646, 1
      %v648 = vadd.f32 %v646, %v647
      %vm657 = vcmask 1041409
      %v658 = vsel %vm657, %v606, %v599
      %vm659 = vcmask 1042434
      %v660 = vsel %vm659, %v613, %v658
      %vm661 = vcmask 1043459
      %v662 = vsel %vm661, %v620, %v660
      %vm663 = vcmask 1044484
      %v664 = vsel %vm663, %v627, %v662
      %vm665 = vcmask 1045509
      %v666 = vsel %vm665, %v634, %v664
      %vm667 = vcmask 1046534
      %v668 = vsel %vm667, %v641, %v666
      %vm669 = vcmask 1047559
      %v670 = vsel %vm669, %v648, %v668
      %671 = vrot.lane.b32.xlu0 %v670, 96
      %v672 = vpop.permute.xlu0 %671
      %v674 = vadd.f32 %v341, %v672
      %vm675 = vcmp.gt.f32.partialorder %v674, 0.0
      %v676 = vmul.f32 %v674, 0.01
      %v677 = vsel %vm675, %v674, %v676
      %679 = vrot.lane.b32.xlu0 %v677, 32
      %v680 = vpop.permute.xlu0 %679
      %682 = vst.msk [vmem:[#allocation2] sm:$0xff] %vm270, %v680
      %p683 = scmp.eq.s32.totalorder %s17, 12
      // Predicated region
      $region49: #{gnn_forward.1} parent=43 // pred_check
        %p684 = pneg %p683
      $region50: #{gnn_forward.1} parent=43 // pred_check_branch
        %686 = sbr.rel (%p684) target = $region52
      $region51: #{gnn_forward.1} parent=43 // pred_region
        %v687 = vld [vmem:[#allocation2] sm:$0xff]
        %v688 = vld [vmem:[%s4] sm:$0xff]
        %v689 = vld [vmem:[%s4 + $0x8] sm:$0xff]
        %v690 = vld [vmem:[%s4 + $0x10] sm:$0xff]
        %v691 = vld [vmem:[%s4 + $0x18] sm:$0xff]
        %v692 = vld [vmem:[%s5] sm:$0x1]
        %v694 = vlaneseq
        %v695 = vshrl.u32 %v694, 7
        %v696 = vsub.s32 0, %v695
        %v697 = vrot.slane %v692, %v696
        %v700 = vsel %vm270, %v687, 0
        %702 = vmatprep.subr.mxu0 0.0
        %703 = vmatpush1.msra.mxu0 %v688
        %704 = vmatprep.subr.mxu0 0.0
        %705 = vmatpush1.msra.mxu0 %v689
        %706 = vmatprep.subr.mxu0 0.0
        %707 = vmatpush1.msra.mxu0 %v690
        %708 = vmatprep.subr.mxu0 0.0
        %709 = vmatpush1.msra.mxu0 %v691
        %710 = vmatprep.subr.mxu0 0.0
        %711 = vmatpush1.msra.mxu0 0.0
        %712 = vmatprep.subr.mxu0 0.0
        %713 = vmatpush1.msra.mxu0 0.0
        %714 = vmatprep.subr.mxu0 0.0
        %715 = vmatpush1.msra.mxu0 0.0
        %716 = vmatprep.subr.mxu0 0.0
        %717 = vmatpush1.msra.mxu0 0.0
        %718 = vmatprep.subr.mxu0 0.0
        %719 = vmatpush1.msra.mxu0 0.0
        %720 = vmatprep.subr.mxu0 0.0
        %721 = vmatpush1.msra.mxu0 0.0
        %722 = vmatprep.subr.mxu0 0.0
        %723 = vmatpush1.msra.mxu0 0.0
        %724 = vmatprep.subr.mxu0 0.0
        %725 = vmatpush1.msra.mxu0 0.0
        %726 = vmatprep.subr.mxu0 0.0
        %727 = vmatpush1.msra.mxu0 0.0
        %728 = vmatprep.subr.mxu0 0.0
        %729 = vmatpush1.msra.mxu0 0.0
        %730 = vmatprep.subr.mxu0 0.0
        %731 = vmatpush1.msra.mxu0 0.0
        %732 = vmatprep.subr.mxu0 0.0
        %733 = vmatpush1.msra.mxu0 0.0
        %734 = vmatprep.subr.mxu0 0.0
        %735 = vmatpush1.msra.mxu0 0.0
        %736 = vmatprep.subr.mxu0 0.0
        %737 = vmatpush1.msra.mxu0 0.0
        %738 = vmatprep.subr.mxu0 0.0
        %739 = vmatpush1.msra.mxu0 0.0
        %740 = vmatprep.subr.mxu0 0.0
        %741 = vmatpush1.msra.mxu0 0.0
        %742 = vmatprep.subr.mxu0 0.0
        %743 = vmatpush1.msra.mxu0 0.0
        %744 = vmatprep.subr.mxu0 0.0
        %745 = vmatpush1.msra.mxu0 0.0
        %746 = vmatprep.subr.mxu0 0.0
        %747 = vmatpush1.msra.mxu0 0.0
        %748 = vmatprep.subr.mxu0 0.0
        %749 = vmatpush1.msra.mxu0 0.0
        %750 = vmatprep.subr.mxu0 0.0
        %751 = vmatpush1.msra.mxu0 0.0
        %752 = vmatprep.subr.mxu0 0.0
        %753 = vmatpush1.msra.mxu0 0.0
        %754 = vmatprep.subr.mxu0 0.0
        %755 = vmatpush1.msra.mxu0 0.0
        %756 = vmatprep.subr.mxu0 0.0
        %757 = vmatpush1.msra.mxu0 0.0
        %758 = vmatprep.subr.mxu0 0.0
        %759 = vmatpush1.msra.mxu0 0.0
        %760 = vmatprep.subr.mxu0 0.0
        %761 = vmatpush1.msra.mxu0 0.0
        %762 = vmatprep.subr.mxu0 0.0
        %763 = vmatpush1.msra.mxu0 0.0
        %764 = vmatprep.subr.mxu0 0.0
        %765 = vmatpush1.msra.mxu0 0.0
        %766 = vmatprep.mubr.f32.mxu0 0.0
        %767 = vmatmul.mubr.f32.gmra.mrb[0].mxu0 %v700
        %v768 = vpop.f32.mrb[0].mxu0
        %v769 = vadd.f32 %v697, %v768
        %v770 = vpop.f32.mrb[0].mxu0
        %771 = vdwg.mxu0
        %772 = vst [vmem:[%s6] sm:$0xff] %v769
      $region52: #{gnn_forward.1} parent=43 // pred_fallthru
        _
      // Predicated region
      $region53: #{gnn_forward.1} parent=43 // pred_check
        %p773 = pneg %p166
      $region54: #{gnn_forward.1} parent=43 // pred_check_branch
        %775 = sbr.rel (%p773) target = $region56
      $region55: #{gnn_forward.1} parent=43 // pred_region
        _
      $region56: #{gnn_forward.1} parent=43 // pred_fallthru
        _
      // Predicated region
      $region57: #{gnn_forward.1} parent=43 // pred_check
        %p776 = pneg %p166
      $region58: #{gnn_forward.1} parent=43 // pred_check_branch
        %778 = sbr.rel (%p776) target = $region60
      $region59: #{gnn_forward.1} parent=43 // pred_region
        _
      $region60: #{gnn_forward.1} parent=43 // pred_fallthru
        _
    $region44: #{gnn_forward.1} parent=5 // pred_fallthru
      _
    %p779 = scmp.le.s32.totalorder 2, %s12
    // Predicated region
    $region61: #{gnn_forward.1} parent=5 // pred_check
      %p780 = pneg %p779
    $region62: #{gnn_forward.1} parent=5 // pred_check_branch
      %782 = sbr.rel (%p780) target = $region64
    $region63: #{gnn_forward.1} parent=5 // pred_region
      %s783 = ssub.s32 %s12, 2
    $region64: #{gnn_forward.1} parent=5 // pred_fallthru
      _
  $region6: #{gnn_forward.1} parent=0 // loop_footer
    %s16 = sadd.s32 1, %s12
  $region7: #{gnn_forward.1} parent=0 // loop_footer_branch
    %11 = sbr.rel target = $region3
  $region8: #{gnn_forward.1} parent=0 // loop_exit
    _

</llo_original>
